<compile_context>
chip_gen: v6e
topology: v6e:2x2x1
jax: 0.10.0
libtpu: 0.0.40
codegen_flags: <defaults>
</compile_context>

<pallas_src>
import jax
import jax.numpy as jnp
from jax.experimental import pallas as pl
from jax.experimental.pallas import tpu as pltpu


def _flatten_copy_kernel(x_ref, o_ref):
    # Pure memcpy of one lane-dense tile; the binding resource is the HBM DMA,
    # there is no MXU/VPU work to do.
    o_ref[...] = x_ref[...]


def _sublane_quantum(dtype) -> int:
    """Rows per fully packed vreg: 8 for 32-bit, 16 for bf16/f16, 32 for int8/fp8."""
    bits = jnp.dtype(dtype).itemsize * 8
    return max(8, 256 // max(bits, 1))


def _generation_caps():
    """Return (per-tile byte cap, vmem_limit_bytes) from the physical VMEM size."""
    vmem_phys = 64 << 20  # conservative default (v7x per-TC)
    try:
        vmem_phys = int(getattr(pltpu.get_tpu_info(), "vmem_capacity_bytes", vmem_phys))
    except Exception:
        pass
    if vmem_phys >= (96 << 20):
        # v5e / v6e: 128 MiB physical VMEM -> bigger tiles, fewer grid steps.
        return 8 << 20, 40 << 20
    # v7x: 64 MiB per TC -> in+out double-buffered (4 buffers) stays <= ~half VMEM.
    return 6 << 20, 32 << 20


def _divisors(n: int):
    out = set()
    d = 1
    while d * d <= n:
        if n % d == 0:
            out.add(d)
            out.add(n // d)
        d += 1
    return sorted(out)


def _pick_slab_layout(total: int, itemsize: int, quantum: int,
                      tile_cap_bytes: int, min_tile_bytes: int):
    """Joint (lane, bb) search for a sublane/lane-dense slab.

    lane : multiple of 128 (128..2048), divides total          -> unmasked lanes
    rows : total // lane, multiple of the dtype sublane quantum -> packed vregs
    bb   : multiple-of-quantum divisor of rows, tile <= cap     -> pipeline tile

    Preference order: tile >= min_tile_bytes, then >=2 grid steps (pipelining /
    both v7x cores), then largest tile bytes, then widest lane.
    """
    best = None  # (key, rows, lane, bb)
    for lane in (2048, 1024, 512, 256, 128):
        if total % lane:
            continue
        rows = total // lane
        if rows % quantum:
            continue
        cap_rows = max(quantum,
                       (tile_cap_bytes // (lane * itemsize)) // quantum * quantum)
        cands = [d for d in _divisors(rows) if d % quantum == 0 and d <= cap_rows]
        if not cands:
            continue
        multi = [d for d in cands if rows // d >= 2]
        picks = []
        if multi:
            picks.append(max(multi))   # largest tile that still gives >=2 steps
        picks.append(max(cands))       # largest tile overall (may be 1 step)
        for bb in picks:
            tile_bytes = bb * lane * itemsize
            meets_min = tile_bytes >= min_tile_bytes
            multi_step = (rows // bb) >= 2
            key = (meets_min, meets_min and multi_step, tile_bytes, lane)
            if best is None or key > best[0]:
                best = (key, rows, lane, bb)
    if best is None:
        return None
    _, rows, lane, bb = best
    return rows, lane, bb


def flatten_forward(x: jax.Array, *, materialize: bool = False) -> jax.Array:
    """Equivalent of torch `x.view(x.size(0), -1)` for a contiguous input."""
    b = x.shape[0]
    f = 1
    for d in x.shape[1:]:
        f *= d

    if not materialize:
        # Flatten is a metadata-only reshape: the zero-cost, preferred answer.
        return x.reshape(b, f)

    total = b * f
    itemsize = jnp.dtype(x.dtype).itemsize
    quantum = _sublane_quantum(x.dtype)
    tile_cap, vmem_limit_cap = _generation_caps()

    layout = _pick_slab_layout(total, itemsize, quantum, tile_cap,
                               min_tile_bytes=1 << 20)

    if layout is None:
        if total * itemsize <= tile_cap:
            # Small, non-factorable total: single full-array block copy
            # (block shape equal to full dims is always legal).
            return pl.pallas_call(
                _flatten_copy_kernel,
                out_shape=jax.ShapeDtypeStruct((b, f), x.dtype),
                grid=(1,),
                in_specs=[pl.BlockSpec((b, f), lambda i: (0, 0))],
                out_specs=pl.BlockSpec((b, f), lambda i: (0, 0)),
                compiler_params=pltpu.CompilerParams(
                    dimension_semantics=("arbitrary",),
                    vmem_limit_bytes=int(min(max(8 * total * itemsize, 8 << 20),
                                             vmem_limit_cap)),
                ),
            )(x.reshape(b, f))
        # Large, non-factorable total: a masked tiled copy (or an HBM->HBM
        # make_async_copy loop) would only add 2x HBM traffic; the metadata
        # reshape is exact and free.
        return x.reshape(b, f)

    rows, lane, bb = layout
    x_slab = x.reshape(rows, lane)  # metadata-only row-major collapse
    tile_bytes = bb * lane * itemsize
    # in + out, double-buffered (4 buffers) plus headroom, generation-capped.
    vmem_limit = int(min(max(5 * tile_bytes, 8 << 20), vmem_limit_cap))

    out_slab = pl.pallas_call(
        _flatten_copy_kernel,
        out_shape=jax.ShapeDtypeStruct((rows, lane), x.dtype),
        grid=(rows // bb,),
        in_specs=[pl.BlockSpec((bb, lane), lambda i: (i, 0))],
        out_specs=pl.BlockSpec((bb, lane), lambda i: (i, 0)),
        compiler_params=pltpu.CompilerParams(
            dimension_semantics=("parallel",),
            vmem_limit_bytes=vmem_limit,
        ),
    )(x_slab)

    # Metadata-only reshape back to the (B, C*H*W) view.
    return out_slab.reshape(b, f)


if __name__ == "__main__":
    key = jax.random.PRNGKey(0)
    k0, k1 = jax.random.split(key)

    # Small conv-net feature map: B=2, C=4, H=W=16  ->  F = 1024.
    x = jax.random.normal(k0, (2, 4, 16, 16), dtype=jnp.float32)
    ref = x.reshape(x.shape[0], -1)

    # Default path: metadata-only reshape (the zero-cost answer for Flatten).
    y = jax.block_until_ready(flatten_forward(x))
    assert y.shape == (2, 4 * 16 * 16), y.shape
    assert y.dtype == x.dtype
    assert bool(jnp.array_equal(y, ref))

    # Materializing Pallas copy kernel on the same small input.
    y_mat = jax.block_until_ready(flatten_forward(x, materialize=True))
    assert y_mat.shape == ref.shape and y_mat.dtype == x.dtype
    assert bool(jnp.array_equal(y_mat, ref))

    # Larger input exercising the tiled, multi-step (>=2) pipelined copy path.
    xl = jax.random.normal(k1, (8, 64, 32, 32), dtype=jnp.float32)
    refl = xl.reshape(xl.shape[0], -1)
    yl = jax.block_until_ready(flatten_forward(xl, materialize=True))
    assert yl.shape == refl.shape and yl.dtype == xl.dtype
    assert bool(jnp.array_equal(yl, refl))

    print("KERNEL_OK")
</pallas_src>

<mosaic_0001>
module attributes {stable_mosaic.version = 11 : i64} {
  func.func @_flatten_copy_kernel(%arg0: i32, %arg1: memref<8x256xf32, #tpu.memory_space<vmem>>, %arg2: memref<8x256xf32, #tpu.memory_space<vmem>>) attributes {dimension_semantics = [#tpu.dimension_semantics<parallel>], iteration_bounds = array<i64: 1>, scalar_prefetch = 0 : i64, scratch_operands = 0 : i64, tpu.core_type = #tpu.core_type<tc>, window_params = [{transform_indices = @transform_0, window_bounds = array<i64: 8, 256>}, {transform_indices = @transform_1, window_bounds = array<i64: 8, 256>}]} {
    %c0 = arith.constant 0 : index
    %c0_0 = arith.constant 0 : index
    %0 = vector.load %arg1[%c0, %c0_0] : memref<8x256xf32, #tpu.memory_space<vmem>>, vector<8x256xf32>
    %c0_1 = arith.constant 0 : index
    %c0_2 = arith.constant 0 : index
    %1 = vector.load %arg2[%c0_1, %c0_2] : memref<8x256xf32, #tpu.memory_space<vmem>>, vector<8x256xf32>
    tpu.vector_store %arg2[%c0_1, %c0_2], %0 {strides = array<i32>} : memref<8x256xf32, #tpu.memory_space<vmem>>, vector<8x256xf32>,
    return
  }
  func.func @transform_0(%arg0: i32) -> (i32, i32) {
    %c0_i32 = arith.constant 0 : i32
    %c0_i32_0 = arith.constant 0 : i32
    return %arg0, %c0_i32 : i32, i32
  }
  func.func @transform_1(%arg0: i32) -> (i32, i32) {
    %c0_i32 = arith.constant 0 : i32
    %c0_i32_0 = arith.constant 0 : i32
    return %arg0, %c0_i32 : i32, i32
  }
}

</mosaic_0001>

<llo_original>
// kernel: tpu_custom_call.1
$region0: #{tpu_custom_call.1}
  #allocation0 [shape = 'u32[]', space=smem, size = 0x4, offset = 0x4, fixed_abs, tag = 'smem constant byte address 0x4 - core index']
  #allocation1 [shape = 'u32[144,128]{1,0:T(1,128)}', space=vmem, size = 0x12000, scoped, tag = 'internal scratch']
  %s0 = inlined_call_operand.hbm [shape: f32[8,256], index: 0, kind: input, shape index: {}]
  %s1 = inlined_call_operand.hbm [shape: f32[8,256], index: 1, kind: output, shape index: {}]
  %s2 = sld [smem:[#allocation0]]
  $region18: #{tpu_custom_call.1} parent=0
    _
  %s4 = ssub.s32 1, %s2
  %s5 = scalar_select 0, %s4, %s2
  $region1: #{tpu_custom_call.1} parent=0
    #allocation2 [shape = 'u8[8192]{0}', space=vmem, size = 0x2000, scoped, tag = 'input window, operand 0, single buffered']
    #allocation3 [shape = 's32[1]{0}', space=sflag, size = 0x4, scoped, tag = 'scoped memory for tpu_custom_call.1']
    #allocation4 [shape = 's32[1]{0}', space=sflag, size = 0x4, scoped, tag = 'scoped memory for tpu_custom_call.1']
    #allocation5 [shape = 'u8[8192]{0}', space=vmem, size = 0x2000, scoped, tag = 'output window, operand 0, single buffered']
    %6 = vsyncpa [#allocation3], 0
    %7 = vsyncpa [#allocation4], 0
    // Predicated region
    $region2: #{tpu_custom_call.1} parent=1 // pred_check
      _
    $region3: #{tpu_custom_call.1} parent=1 // pred_check_branch
      %9 = sbr.rel (0) target = $region5
    $region4: #{tpu_custom_call.1} parent=1 // pred_region
      %s11 = ssub.s32 256, 256
      %12 = vsyncadd [#allocation3], %s11
      %s14 = sshll.u32 [#allocation2], 4
      %s15 = int_to_ptr.vmem [resolvable:$true] %s14
      %17 = dma.hbm_to_vmem [thread:$0]  %s0, 256, %s15, [#allocation3]
    $region5: #{tpu_custom_call.1} parent=1 // pred_fallthru
      _
    // Predicated region
    $region6: #{tpu_custom_call.1} parent=1 // pred_check
      _
    $region7: #{tpu_custom_call.1} parent=1 // pred_check_branch
      %19 = sbr.rel (0) target = $region9
    $region8: #{tpu_custom_call.1} parent=1 // pred_region
      %20 = dma.done [#allocation3], 256
    $region9: #{tpu_custom_call.1} parent=1 // pred_fallthru
      _
    %v21 = vld [vmem:[#allocation2] sm:$0xff]
    %v22 = vld [vmem:[#allocation2 + $0x8] sm:$0xff]
    %23 = vst [vmem:[#allocation5] sm:$0xff] %v21
    %24 = vst [vmem:[#allocation5 + $0x8] sm:$0xff] %v22
    // Predicated region
    $region10: #{tpu_custom_call.1} parent=1 // pred_check
      _
    $region11: #{tpu_custom_call.1} parent=1 // pred_check_branch
      %26 = sbr.rel (0) target = $region13
    $region12: #{tpu_custom_call.1} parent=1 // pred_region
      %s28 = ssub.s32 256, 256
      %29 = vsyncadd [#allocation4], %s28
      %s31 = sshll.u32 [#allocation5], 4
      %s32 = int_to_ptr.vmem [resolvable:$true] %s31
      %34 = dma.vmem_to_hbm [thread:$0]  %s32, 256, %s1, [#allocation4]
    $region13: #{tpu_custom_call.1} parent=1 // pred_fallthru
      _
    // Predicated region
    $region14: #{tpu_custom_call.1} parent=1 // pred_check
      _
    $region15: #{tpu_custom_call.1} parent=1 // pred_check_branch
      %36 = sbr.rel (0) target = $region17
    $region16: #{tpu_custom_call.1} parent=1 // pred_region
      %37 = dma.done [#allocation4], 256
    $region17: #{tpu_custom_call.1} parent=1 // pred_fallthru
      _
    %38 = vsyncpa [#allocation3], 1
    %39 = vsyncpa [#allocation4], 1

</llo_original>
